<compile_context>
chip_gen: v6e
topology: v6e:2x2x1
jax: 0.10.0
libtpu: 0.0.40
codegen_flags: <defaults>
</compile_context>

<pallas_src>
import functools

import jax
import jax.numpy as jnp
from jax.experimental import pallas as pl
from jax.experimental.pallas import tpu as pltpu


def _round_up(v, m):
    return ((v + m - 1) // m) * m


def velodrome_kernel(x_ref, w0_ref, b0_ref, wc_ref, bc_ref, out_ref):
    # x_ref:  (TILE_N, F)   w0_ref: (F, H)   b0_ref: (1, H)
    # wc_ref: (H, 1)        bc_ref: (1, 1)   out_ref: (TILE_N, 1)
    # Shared feature extractor: Linear + ReLU (Dropout is identity in eval mode).
    fx = jnp.dot(x_ref[...], w0_ref[...],
                 preferred_element_type=jnp.float32) + b0_ref[...]
    fx = jnp.maximum(fx, 0.0)
    # Single folded ensemble head (a1*pred1 + a2*pred2 pre-combined into wc/bc).
    out_ref[...] = jnp.dot(fx, wc_ref[...],
                           preferred_element_type=jnp.float32) + bc_ref[...]


@functools.partial(jax.jit, static_argnames=("tile_n",))
def velodrome_forward(x, params, w1_mean, w2_mean, tile_n=1024):
    """x: (N, F) float32. Returns (N, 1) float32."""
    n, f = x.shape
    h = params["w0"].shape[1]

    # softmax over the two stored scalar weights (plain JAX glue, negligible cost)
    w_n = jax.nn.softmax(jnp.stack([w1_mean, w2_mean]).astype(jnp.float32))

    # Fold the two prediction heads + ensemble scalars into one (H, 1) head.
    w_comb = w_n[0] * params["wp1"] + w_n[1] * params["wp2"]   # (H, 1)
    b_comb = w_n[0] * params["bp1"] + w_n[1] * params["bp2"]   # (1, 1)

    # Tile the batch: multiple of 8 sublanes, pad N up so the grid divides evenly.
    tile = min(tile_n, _round_up(n, 8))
    tile = max(8, _round_up(tile, 8))
    n_pad = _round_up(n, tile)
    if n_pad != n:
        x = jnp.pad(x, ((0, n_pad - n), (0, 0)))
    grid = (n_pad // tile,)

    cost = pl.CostEstimate(
        flops=2 * n_pad * f * h + 2 * n_pad * h,
        transcendentals=0,
        bytes_accessed=n_pad * f * 4 + f * h * 4 + h * 4 + 2 * h * 4 + n_pad * 4,
    )

    out = pl.pallas_call(
        velodrome_kernel,
        out_shape=jax.ShapeDtypeStruct((n_pad, 1), jnp.float32),
        grid_spec=pltpu.PrefetchScalarGridSpec(
            num_scalar_prefetch=0,
            grid=grid,
            in_specs=[
                pl.BlockSpec((tile, f), lambda i: (i, 0)),   # X: streamed per tile
                pl.BlockSpec((f, h), lambda i: (0, 0)),      # w0: resident
                pl.BlockSpec((1, h), lambda i: (0, 0)),      # b0: resident
                pl.BlockSpec((h, 1), lambda i: (0, 0)),      # folded head weight
                pl.BlockSpec((1, 1), lambda i: (0, 0)),      # folded head bias
            ],
            out_specs=pl.BlockSpec((tile, 1), lambda i: (i, 0)),
        ),
        compiler_params=pltpu.CompilerParams(
            dimension_semantics=("parallel",),            # split across 2 TCs on v7x
            vmem_limit_bytes=48 * 1024 * 1024,            # headroom under v7x 64 MiB
        ),
        cost_estimate=cost,
    )(x, params["w0"], params["b0"], w_comb, b_comb)

    return out[:n]


def make_params(key, n_features, n_hidden):
    k0, k1, k2, k3, k4, k5 = jax.random.split(key, 6)
    scale0 = 1.0 / jnp.sqrt(n_features)
    scaleh = 1.0 / jnp.sqrt(n_hidden)
    return {
        "w0":  jax.random.uniform(k0, (n_features, n_hidden), jnp.float32, -scale0, scale0),
        "b0":  jax.random.uniform(k1, (1, n_hidden), jnp.float32, -scale0, scale0),
        "wp1": jax.random.uniform(k2, (n_hidden, 1), jnp.float32, -scaleh, scaleh),
        "bp1": jax.random.uniform(k3, (1, 1), jnp.float32, -scaleh, scaleh),
        "wp2": jax.random.uniform(k4, (n_hidden, 1), jnp.float32, -scaleh, scaleh),
        "bp2": jax.random.uniform(k5, (1, 1), jnp.float32, -scaleh, scaleh),
    }


def reference_forward(x, params, w1_mean, w2_mean):
    w_n = jax.nn.softmax(jnp.stack([w1_mean, w2_mean]).astype(jnp.float32))
    fx = jnp.maximum(x @ params["w0"] + params["b0"], 0.0)
    p1 = fx @ params["wp1"] + params["bp1"]
    p2 = fx @ params["wp2"] + params["bp2"]
    return w_n[0] * p1 + w_n[1] * p2


if __name__ == "__main__":
    key = jax.random.PRNGKey(0)
    k_x, k_x2, k_x3, k_p = jax.random.split(key, 4)

    F, H = 64, 32  # input mutation features, hidden dim
    params = make_params(k_p, F, H)

    # self.w1 / self.w2 are lists of torch.tensor(0.5); their means are 0.5
    w1_mean = jnp.float32(0.5)
    w2_mean = jnp.float32(0.5)

    # Case 1: tiny batch (single grid step)
    N1 = 8
    x1 = jax.random.normal(k_x, (N1, F), dtype=jnp.float32)
    out1 = jax.block_until_ready(velodrome_forward(x1, params, w1_mean, w2_mean))
    ref1 = reference_forward(x1, params, w1_mean, w2_mean)
    assert out1.shape == (N1, 1)
    assert jnp.allclose(out1, ref1, atol=1e-5, rtol=1e-5)

    # Case 2: multi-tile batch with padding (exercises grid + BlockSpec streaming)
    N2 = 300
    x2 = jax.random.normal(k_x2, (N2, F), dtype=jnp.float32)
    out2 = jax.block_until_ready(
        velodrome_forward(x2, params, w1_mean, w2_mean, tile_n=128))
    ref2 = reference_forward(x2, params, w1_mean, w2_mean)
    assert out2.shape == (N2, 1)
    assert jnp.allclose(out2, ref2, atol=1e-5, rtol=1e-5)

    # Case 3: multi-tile at the default (large) tile size with padding
    N3 = 2304
    x3 = jax.random.normal(k_x3, (N3, F), dtype=jnp.float32)
    out3 = jax.block_until_ready(velodrome_forward(x3, params, w1_mean, w2_mean))
    ref3 = reference_forward(x3, params, w1_mean, w2_mean)
    assert out3.shape == (N3, 1)
    assert jnp.allclose(out3, ref3, atol=1e-5, rtol=1e-5)

    print("KERNEL_OK")
</pallas_src>

<mosaic_0001>
module attributes {stable_mosaic.version = 11 : i64} {
  func.func @velodrome_kernel(%arg0: i32, %arg1: memref<8x64xf32, #tpu.memory_space<vmem>>, %arg2: memref<64x32xf32, #tpu.memory_space<vmem>>, %arg3: memref<1x32xf32, #tpu.memory_space<vmem>>, %arg4: memref<32x1xf32, #tpu.memory_space<vmem>>, %arg5: memref<1x1xf32, #tpu.memory_space<vmem>>, %arg6: memref<8x1xf32, #tpu.memory_space<vmem>>) attributes {dimension_semantics = [#tpu.dimension_semantics<parallel>], iteration_bounds = array<i64: 1>, scalar_prefetch = 0 : i64, scratch_operands = 0 : i64, tpu.core_type = #tpu.core_type<tc>, window_params = [{transform_indices = @transform_0, window_bounds = array<i64: 8, 64>}, {pipeline_mode = #tpu.pipeline_mode<synchronous>, transform_indices = @transform_1, window_bounds = array<i64: 64, 32>}, {pipeline_mode = #tpu.pipeline_mode<synchronous>, transform_indices = @transform_2, window_bounds = array<i64: 1, 32>}, {pipeline_mode = #tpu.pipeline_mode<synchronous>, transform_indices = @transform_3, window_bounds = array<i64: 32, 1>}, {pipeline_mode = #tpu.pipeline_mode<synchronous>, transform_indices = @transform_4, window_bounds = array<i64: 1, 1>}, {transform_indices = @transform_5, window_bounds = array<i64: 8, 1>}]} {
    %c0 = arith.constant 0 : index
    %c0_0 = arith.constant 0 : index
    %0 = vector.load %arg1[%c0, %c0_0] : memref<8x64xf32, #tpu.memory_space<vmem>>, vector<8x64xf32>
    %c0_1 = arith.constant 0 : index
    %c0_2 = arith.constant 0 : index
    %1 = vector.load %arg2[%c0_1, %c0_2] : memref<64x32xf32, #tpu.memory_space<vmem>>, vector<64x32xf32>
    %cst = arith.constant dense<0.000000e+00> : vector<8x32xf32>
    %2 = tpu.matmul %0, %1, %cst {dimension_numbers = #tpu.dot_dimension_numbers<[1], [0], [0], [1], [0, 0, 1, 1], [], []>} : vector<8x64xf32>, vector<64x32xf32>, vector<8x32xf32> -> vector<8x32xf32>
    %c0_3 = arith.constant 0 : index
    %c0_4 = arith.constant 0 : index
    %3 = vector.load %arg3[%c0_3, %c0_4] : memref<1x32xf32, #tpu.memory_space<vmem>>, vector<1x32xf32>
    %4 = vector.broadcast %3 : vector<1x32xf32> to vector<8x32xf32>
    %5 = arith.addf %2, %4 : vector<8x32xf32>
    %cst_5 = arith.constant 0.000000e+00 : f32
    %6 = vector.broadcast %cst_5 : f32 to vector<8x32xf32>
    %7 = arith.maximumf %5, %6 : vector<8x32xf32>
    %c0_6 = arith.constant 0 : index
    %c0_7 = arith.constant 0 : index
    %8 = vector.load %arg4[%c0_6, %c0_7] : memref<32x1xf32, #tpu.memory_space<vmem>>, vector<32x1xf32>
    %cst_8 = arith.constant dense<0.000000e+00> : vector<8x1xf32>
    %9 = tpu.matmul %7, %8, %cst_8 {dimension_numbers = #tpu.dot_dimension_numbers<[1], [0], [0], [1], [0, 0, 1, 1], [], []>} : vector<8x32xf32>, vector<32x1xf32>, vector<8x1xf32> -> vector<8x1xf32>
    %c0_9 = arith.constant 0 : index
    %c0_10 = arith.constant 0 : index
    %10 = vector.load %arg5[%c0_9, %c0_10] : memref<1x1xf32, #tpu.memory_space<vmem>>, vector<1x1xf32>
    %11 = vector.broadcast %10 : vector<1x1xf32> to vector<8x1xf32>
    %12 = arith.addf %9, %11 : vector<8x1xf32>
    %c0_11 = arith.constant 0 : index
    %c0_12 = arith.constant 0 : index
    %13 = vector.load %arg6[%c0_11, %c0_12] : memref<8x1xf32, #tpu.memory_space<vmem>>, vector<8x1xf32>
    tpu.vector_store %arg6[%c0_11, %c0_12], %12 {strides = array<i32>} : memref<8x1xf32, #tpu.memory_space<vmem>>, vector<8x1xf32>,
    return
  }
  func.func @transform_0(%arg0: i32) -> (i32, i32) {
    %c0_i32 = arith.constant 0 : i32
    %c0_i32_0 = arith.constant 0 : i32
    return %arg0, %c0_i32 : i32, i32
  }
  func.func @transform_1(%arg0: i32) -> (i32, i32) {
    %c0_i32 = arith.constant 0 : i32
    %c0_i32_0 = arith.constant 0 : i32
    %c0_i32_1 = arith.constant 0 : i32
    return %c0_i32, %c0_i32_0 : i32, i32
  }
  func.func @transform_2(%arg0: i32) -> (i32, i32) {
    %c0_i32 = arith.constant 0 : i32
    %c0_i32_0 = arith.constant 0 : i32
    %c0_i32_1 = arith.constant 0 : i32
    return %c0_i32, %c0_i32_0 : i32, i32
  }
  func.func @transform_3(%arg0: i32) -> (i32, i32) {
    %c0_i32 = arith.constant 0 : i32
    %c0_i32_0 = arith.constant 0 : i32
    %c0_i32_1 = arith.constant 0 : i32
    return %c0_i32, %c0_i32_0 : i32, i32
  }
  func.func @transform_4(%arg0: i32) -> (i32, i32) {
    %c0_i32 = arith.constant 0 : i32
    %c0_i32_0 = arith.constant 0 : i32
    %c0_i32_1 = arith.constant 0 : i32
    return %c0_i32, %c0_i32_0 : i32, i32
  }
  func.func @transform_5(%arg0: i32) -> (i32, i32) {
    %c0_i32 = arith.constant 0 : i32
    %c0_i32_0 = arith.constant 0 : i32
    return %arg0, %c0_i32 : i32, i32
  }
}

</mosaic_0001>

<llo_original>
// kernel: velodrome_forward.1
$region0: #{velodrome_forward.1}
  #allocation0 [shape = 'u32[]', space=smem, size = 0x4, offset = 0x4, fixed_abs, tag = 'smem constant byte address 0x4 - core index']
  #allocation1 [shape = 'u32[144,128]{1,0:T(1,128)}', space=vmem, size = 0x12000, scoped, tag = 'internal scratch']
  #allocation2 [shape = 'f32[1,1]{1,0:T(1,128)S(1)}', space=vmem, size = 0x200, scoped, tag = 'scoped memory for velodrome_forward.1']
  %s0 = inlined_call_operand.vmem [shape: f32[8,64], index: 0, kind: input, shape index: {}]
  %s1 = inlined_call_operand.vmem [shape: f32[64,32], index: 1, kind: input, shape index: {}]
  %s2 = inlined_call_operand.vmem [shape: f32[1,32], index: 2, kind: input, shape index: {}]
  %s3 = inlined_call_operand.vmem [shape: f32[32,1], index: 3, kind: input, shape index: {}]
  %s4 = inlined_call_operand.<no memory space> [shape: f32[1,1], index: 4, kind: input, shape index: {}]
  %s5 = inlined_call_operand.vmem [shape: f32[8,1], index: 5, kind: output, shape index: {}]
  %s6 = sld [smem:[#allocation0]]
  $region30: #{velodrome_forward.1} parent=0
    _
  %s8 = ssub.s32 1, %s6
  %s9 = scalar_select 0, %s8, %s6
  %v10 = vstv %s4
  %11 = vst [vmem:[#allocation2] sm:$0x1] %v10
  // Predicated region
  $region2: #{velodrome_forward.1} parent=0 // pred_check
    _
  $region3: #{velodrome_forward.1} parent=0 // pred_check_branch
    %13 = sbr.rel (0) target = $region5
  $region4: #{velodrome_forward.1} parent=0 // pred_region
    _
  $region5: #{velodrome_forward.1} parent=0 // pred_fallthru
    _
  // Predicated region
  $region6: #{velodrome_forward.1} parent=0 // pred_check
    _
  $region7: #{velodrome_forward.1} parent=0 // pred_check_branch
    %15 = sbr.rel (0) target = $region9
  $region8: #{velodrome_forward.1} parent=0 // pred_region
    _
  $region9: #{velodrome_forward.1} parent=0 // pred_fallthru
    _
  // Predicated region
  $region10: #{velodrome_forward.1} parent=0 // pred_check
    _
  $region11: #{velodrome_forward.1} parent=0 // pred_check_branch
    %17 = sbr.rel (0) target = $region13
  $region12: #{velodrome_forward.1} parent=0 // pred_region
    _
  $region13: #{velodrome_forward.1} parent=0 // pred_fallthru
    _
  // Predicated region
  $region14: #{velodrome_forward.1} parent=0 // pred_check
    _
  $region15: #{velodrome_forward.1} parent=0 // pred_check_branch
    %19 = sbr.rel (0) target = $region17
  $region16: #{velodrome_forward.1} parent=0 // pred_region
    _
  $region17: #{velodrome_forward.1} parent=0 // pred_fallthru
    _
  // Predicated region
  $region18: #{velodrome_forward.1} parent=0 // pred_check
    _
  $region19: #{velodrome_forward.1} parent=0 // pred_check_branch
    %21 = sbr.rel (0) target = $region21
  $region20: #{velodrome_forward.1} parent=0 // pred_region
    _
  $region21: #{velodrome_forward.1} parent=0 // pred_fallthru
    _
  %v22 = vld [vmem:[%s0] sm:$0xff]
  %v23 = vld [vmem:[%s1] sm:$0xff]
  %v24 = vld [vmem:[%s1 + $0x8] sm:$0xff]
  %v25 = vld [vmem:[%s1 + $0x10] sm:$0xff]
  %v26 = vld [vmem:[%s1 + $0x18] sm:$0xff]
  %v27 = vld [vmem:[%s1 + $0x20] sm:$0xff]
  %v28 = vld [vmem:[%s1 + $0x28] sm:$0xff]
  %v29 = vld [vmem:[%s1 + $0x30] sm:$0xff]
  %v30 = vld [vmem:[%s1 + $0x38] sm:$0xff]
  %v31 = vld [vmem:[%s2] sm:$0x1]
  %v33 = vlaneseq
  %v34 = vshrl.u32 %v33, 7
  %v35 = vsub.s32 0, %v34
  %v36 = vrot.slane %v31, %v35
  %vm38 = vcmask 523264
  %v40 = vsel %vm38, %v22, 0
  %42 = vmatprep.subr.mxu0 0.0
  %43 = vmatpush1.msra.mxu0 0.0
  %44 = vmatprep.subr.mxu0 0.0
  %45 = vmatpush1.msra.mxu0 0.0
  %46 = vmatprep.subr.mxu0 0.0
  %47 = vmatpush1.msra.mxu0 0.0
  %48 = vmatprep.subr.mxu0 0.0
  %49 = vmatpush1.msra.mxu0 0.0
  %50 = vmatprep.subr.mxu0 0.0
  %51 = vmatpush1.msra.mxu0 0.0
  %52 = vmatprep.subr.mxu0 0.0
  %53 = vmatpush1.msra.mxu0 0.0
  %54 = vmatprep.subr.mxu0 0.0
  %55 = vmatpush1.msra.mxu0 0.0
  %56 = vmatprep.subr.mxu0 0.0
  %57 = vmatpush1.msra.mxu0 0.0
  %58 = vmatprep.subr.mxu0 0.0
  %59 = vmatpush1.msra.mxu0 %v30
  %60 = vmatprep.subr.mxu0 0.0
  %61 = vmatpush1.msra.mxu0 %v29
  %62 = vmatprep.subr.mxu0 0.0
  %63 = vmatpush1.msra.mxu0 %v28
  %64 = vmatprep.subr.mxu0 0.0
  %65 = vmatpush1.msra.mxu0 %v27
  %66 = vmatprep.subr.mxu0 0.0
  %67 = vmatpush1.msra.mxu0 %v26
  %68 = vmatprep.subr.mxu0 0.0
  %69 = vmatpush1.msra.mxu0 %v25
  %70 = vmatprep.subr.mxu0 0.0
  %71 = vmatpush1.msra.mxu0 %v24
  %72 = vmatprep.subr.mxu0 0.0
  %73 = vmatpush1.msra.mxu0 %v23
  %74 = vmatprep.subr.mxu0 0.0
  %75 = vmatpush2.msra.mxu0 0.0
  %76 = vmatprep.subr.mxu0 0.0
  %77 = vmatpush2.msra.mxu0 0.0
  %78 = vmatprep.subr.mxu0 0.0
  %79 = vmatpush2.msra.mxu0 0.0
  %80 = vmatprep.subr.mxu0 0.0
  %81 = vmatpush2.msra.mxu0 0.0
  %82 = vmatprep.subr.mxu0 0.0
  %83 = vmatpush2.msra.mxu0 0.0
  %84 = vmatprep.subr.mxu0 0.0
  %85 = vmatpush2.msra.mxu0 0.0
  %86 = vmatprep.subr.mxu0 0.0
  %87 = vmatpush2.msra.mxu0 0.0
  %88 = vmatprep.subr.mxu0 0.0
  %89 = vmatpush2.msra.mxu0 0.0
  %90 = vmatprep.subr.mxu0 0.0
  %91 = vmatpush2.msra.mxu0 0.0
  %92 = vmatprep.subr.mxu0 0.0
  %93 = vmatpush2.msra.mxu0 0.0
  %94 = vmatprep.subr.mxu0 0.0
  %95 = vmatpush2.msra.mxu0 0.0
  %96 = vmatprep.subr.mxu0 0.0
  %97 = vmatpush2.msra.mxu0 0.0
  %98 = vmatprep.subr.mxu0 0.0
  %99 = vmatpush2.msra.mxu0 0.0
  %100 = vmatprep.subr.mxu0 0.0
  %101 = vmatpush2.msra.mxu0 0.0
  %102 = vmatprep.subr.mxu0 0.0
  %103 = vmatpush2.msra.mxu0 0.0
  %104 = vmatprep.subr.mxu0 0.0
  %105 = vmatpush2.msra.mxu0 0.0
  %106 = vmatprep.mubr.f32.mxu0 0.0
  %107 = vmatmul.mubr.f32.gmra.mxu0 %v40
  %v108 = vpop.f32.mrf.mxu0
  %v109 = vadd.f32 %v36, %v108
  %v110 = vpop.f32.mrf.mxu0
  %111 = vdwg.mxu0
  %v112 = vmax.f32 %v109, 0.0
  %v113 = vld [vmem:[%s3] sm:$0xff]
  %v114 = vld [vmem:[%s3 + $0x8] sm:$0xff]
  %v115 = vld [vmem:[%s3 + $0x10] sm:$0xff]
  %v116 = vld [vmem:[%s3 + $0x18] sm:$0xff]
  %v117 = vld [vmem:[#allocation2] sm:$0x1]
  %v119 = vlaneseq
  %v120 = vshrl.u32 %v119, 7
  %v121 = vsub.s32 0, %v120
  %v122 = vrot.slane %v117, %v121
  %vm124 = vcmask 261120
  %v126 = vsel %vm124, %v112, 0
  %128 = vmatprep.subr.mxu0 0.0
  %129 = vmatpush1.msra.mxu0 0.0
  %130 = vmatprep.subr.mxu0 0.0
  %131 = vmatpush1.msra.mxu0 0.0
  %132 = vmatprep.subr.mxu0 0.0
  %133 = vmatpush1.msra.mxu0 0.0
  %134 = vmatprep.subr.mxu0 0.0
  %135 = vmatpush1.msra.mxu0 0.0
  %136 = vmatprep.subr.mxu0 0.0
  %137 = vmatpush1.msra.mxu0 0.0
  %138 = vmatprep.subr.mxu0 0.0
  %139 = vmatpush1.msra.mxu0 0.0
  %140 = vmatprep.subr.mxu0 0.0
  %141 = vmatpush1.msra.mxu0 0.0
  %142 = vmatprep.subr.mxu0 0.0
  %143 = vmatpush1.msra.mxu0 0.0
  %144 = vmatprep.subr.mxu0 0.0
  %145 = vmatpush1.msra.mxu0 0.0
  %146 = vmatprep.subr.mxu0 0.0
  %147 = vmatpush1.msra.mxu0 0.0
  %148 = vmatprep.subr.mxu0 0.0
  %149 = vmatpush1.msra.mxu0 0.0
  %150 = vmatprep.subr.mxu0 0.0
  %151 = vmatpush1.msra.mxu0 0.0
  %152 = vmatprep.subr.mxu0 0.0
  %153 = vmatpush1.msra.mxu0 %v116
  %154 = vmatprep.subr.mxu0 0.0
  %155 = vmatpush1.msra.mxu0 %v115
  %156 = vmatprep.subr.mxu0 0.0
  %157 = vmatpush1.msra.mxu0 %v114
  %158 = vmatprep.subr.mxu0 0.0
  %159 = vmatpush1.msra.mxu0 %v113
  %160 = vmatprep.subr.mxu0 0.0
  %161 = vmatpush2.msra.mxu0 0.0
  %162 = vmatprep.subr.mxu0 0.0
  %163 = vmatpush2.msra.mxu0 0.0
  %164 = vmatprep.subr.mxu0 0.0
  %165 = vmatpush2.msra.mxu0 0.0
  %166 = vmatprep.subr.mxu0 0.0
  %167 = vmatpush2.msra.mxu0 0.0
  %168 = vmatprep.subr.mxu0 0.0
  %169 = vmatpush2.msra.mxu0 0.0
  %170 = vmatprep.subr.mxu0 0.0
  %171 = vmatpush2.msra.mxu0 0.0
  %172 = vmatprep.subr.mxu0 0.0
  %173 = vmatpush2.msra.mxu0 0.0
  %174 = vmatprep.subr.mxu0 0.0
  %175 = vmatpush2.msra.mxu0 0.0
  %176 = vmatprep.subr.mxu0 0.0
  %177 = vmatpush2.msra.mxu0 0.0
  %178 = vmatprep.subr.mxu0 0.0
  %179 = vmatpush2.msra.mxu0 0.0
  %180 = vmatprep.subr.mxu0 0.0
  %181 = vmatpush2.msra.mxu0 0.0
  %182 = vmatprep.subr.mxu0 0.0
  %183 = vmatpush2.msra.mxu0 0.0
  %184 = vmatprep.subr.mxu0 0.0
  %185 = vmatpush2.msra.mxu0 0.0
  %186 = vmatprep.subr.mxu0 0.0
  %187 = vmatpush2.msra.mxu0 0.0
  %188 = vmatprep.subr.mxu0 0.0
  %189 = vmatpush2.msra.mxu0 0.0
  %190 = vmatprep.subr.mxu0 0.0
  %191 = vmatpush2.msra.mxu0 0.0
  %192 = vmatprep.mubr.f32.mxu0 0.0
  %193 = vmatmul.mubr.f32.gmra.mxu0 %v126
  %v194 = vpop.f32.mrf.mxu0
  %v195 = vadd.f32 %v122, %v194
  %v196 = vpop.f32.mrf.mxu0
  %197 = vdwg.mxu0
  %vm198 = vcmask 7168
  %199 = vst.msk [vmem:[%s5] sm:$0xff] %vm198, %v195
  // Predicated region
  $region22: #{velodrome_forward.1} parent=0 // pred_check
    _
  $region23: #{velodrome_forward.1} parent=0 // pred_check_branch
    %201 = sbr.rel (0) target = $region25
  $region24: #{velodrome_forward.1} parent=0 // pred_region
    _
  $region25: #{velodrome_forward.1} parent=0 // pred_fallthru
    _
  // Predicated region
  $region26: #{velodrome_forward.1} parent=0 // pred_check
    _
  $region27: #{velodrome_forward.1} parent=0 // pred_check_branch
    %203 = sbr.rel (0) target = $region29
  $region28: #{velodrome_forward.1} parent=0 // pred_region
    _
  $region29: #{velodrome_forward.1} parent=0 // pred_fallthru
    _

</llo_original>
